<compile_context>
chip_gen: v7x
topology: tpu7x:2x2x1
jax: 0.10.0
libtpu: 0.0.40
codegen_flags: <defaults>
</compile_context>

<pallas_src>
import functools

import jax
import jax.numpy as jnp
from jax.experimental import pallas as pl
from jax.experimental.pallas import tpu as pltpu

_LANE = 128


def _round_up(x, m):
    return (x + m - 1) // m * m


def _dqn_kernel(x_ref,
                w1_ref, b1_ref,
                w2_ref, b2_ref,
                w3_ref, b3_ref,
                w4_ref, b4_ref,
                out_ref):
    """Fused MLP on one feature-major batch tile: tanh(fc1)->tanh(fc2)->tanh(fc3)->fc4.

    Shapes (per grid step):
      x_ref   : (obs_dim, TB)   f32
      wN_ref  : (dN, dN_in)     f32 for fc1, bf16 for fc2..fc4
      bN_ref  : (dN, 1)         f32 (lane-broadcast)
      out_ref : (n_actions, TB) f32
    """
    x = x_ref[...]                                                     # f32 (obs_dim, TB)

    # fc1 in f32: K = obs_dim is tiny, preserves input precision.
    h = jnp.dot(w1_ref[...], x, preferred_element_type=jnp.float32) + b1_ref[...]
    h = jnp.tanh(h)                                                    # f32 (d1, TB)

    h = jnp.dot(w2_ref[...], h.astype(jnp.bfloat16),
                preferred_element_type=jnp.float32) + b2_ref[...]
    h = jnp.tanh(h)                                                    # f32 (d2, TB)

    h = jnp.dot(w3_ref[...], h.astype(jnp.bfloat16),
                preferred_element_type=jnp.float32) + b3_ref[...]
    h = jnp.tanh(h)                                                    # f32 (d3, TB)

    out = jnp.dot(w4_ref[...], h.astype(jnp.bfloat16),
                  preferred_element_type=jnp.float32) + b4_ref[...]
    out_ref[...] = out.astype(out_ref.dtype)                           # (n_actions, TB)


def prepare_params(params):
    """One-time parameter prep, hoisted out of the per-call path.

    params: dict layer -> (w [out, in] f32, b [out] f32)  (PyTorch nn.Linear layout).
    Returns a flat tuple: fc1 weight stays f32, fc2..fc4 weights cast to bf16,
    all biases reshaped to [out, 1] f32 for lane-broadcast in the feature-major layout.
    """
    w1, b1 = params["fc1"]
    w2, b2 = params["fc2"]
    w3, b3 = params["fc3"]
    w4, b4 = params["fc4"]
    return (w1.astype(jnp.float32),  b1.reshape(-1, 1).astype(jnp.float32),
            w2.astype(jnp.bfloat16), b2.reshape(-1, 1).astype(jnp.float32),
            w3.astype(jnp.bfloat16), b3.reshape(-1, 1).astype(jnp.float32),
            w4.astype(jnp.bfloat16), b4.reshape(-1, 1).astype(jnp.float32))


@functools.partial(jax.jit, static_argnames=("block_batch",))
def dqn_forward(state, prepared, *, block_batch=512):
    """state: [B, obs_dim] f32.  prepared: tuple from prepare_params().  Returns [B, n_actions] f32."""
    w1, b1, w2, b2, w3, b3, w4, b4 = prepared

    state = state.astype(jnp.float32)
    batch, obs_dim = state.shape
    d1, d2, d3 = w1.shape[0], w2.shape[0], w3.shape[0]
    n_actions = w4.shape[0]

    # --- batch tiling: lane-multiple tiles; >= 2 grid steps when batch allows (v7x megacore);
    #     capped at block_batch to keep the live f32 intermediate within the vreg budget. ---
    lane_blocks = _round_up(batch, _LANE) // _LANE
    if lane_blocks >= 2:
        tb = min(block_batch, ((lane_blocks + 1) // 2) * _LANE)
    else:
        tb = _LANE
    tb = _round_up(tb, _LANE)
    b_pad = _round_up(batch, tb)
    grid = (b_pad // tb,)

    # Feature-major input: [obs_dim, b_pad], batch on the 128-lane axis.
    x_t = state.T
    if b_pad != batch:
        x_t = jnp.pad(x_t, ((0, 0), (0, b_pad - batch)))

    x_spec = pl.BlockSpec((obs_dim, tb), lambda i: (0, i))
    out_spec = pl.BlockSpec((n_actions, tb), lambda i: (0, i))

    def resident(shape):
        # Full-array block with a constant block index -> DMA'd once, resident in VMEM.
        return pl.BlockSpec(shape, lambda i: (0, 0))

    in_specs = [
        x_spec,
        resident(w1.shape), resident(b1.shape),
        resident(w2.shape), resident(b2.shape),
        resident(w3.shape), resident(b3.shape),
        resident(w4.shape), resident(b4.shape),
    ]

    # Advisory cost for XLA's scheduler around the custom call.
    mac = obs_dim * d1 + d1 * d2 + d2 * d3 + d3 * n_actions
    cost = pl.CostEstimate(
        flops=2 * b_pad * mac,
        transcendentals=b_pad * (d1 + d2 + d3),
        bytes_accessed=(b_pad * obs_dim * 4                 # x in (f32)
                        + b_pad * n_actions * 4             # out (f32, no lane padding)
                        + 4 * obs_dim * d1                  # fc1 weights (f32)
                        + 2 * (d1 * d2 + d2 * d3 + d3 * n_actions)  # bf16 weights
                        + 4 * (d1 + d2 + d3 + n_actions)),  # f32 biases
    )

    out_t = pl.pallas_call(
        _dqn_kernel,
        out_shape=jax.ShapeDtypeStruct((n_actions, b_pad), jnp.float32),
        grid=grid,
        in_specs=in_specs,
        out_specs=out_spec,
        compiler_params=pltpu.CompilerParams(
            dimension_semantics=("parallel",)),
        cost_estimate=cost,
    )(x_t, w1, b1, w2, b2, w3, b3, w4, b4)

    # Back to [batch, n_actions]; strip batch padding.
    return out_t[:, :batch].T


def init_linear(key, fan_in, fan_out):
    """Deterministic init mimicking PyTorch nn.Linear: U(-1/sqrt(fan_in), +1/sqrt(fan_in)).

    Returns (w [out, in], b [out]) -- PyTorch layout.
    """
    kw, kb = jax.random.split(key)
    bound = 1.0 / jnp.sqrt(jnp.float32(fan_in))
    w = jax.random.uniform(kw, (fan_out, fan_in), jnp.float32, -bound, bound)
    b = jax.random.uniform(kb, (fan_out,), jnp.float32, -bound, bound)
    return w, b


def reference_forward_f32(state, params):
    """Pure-f32 reference matching the PyTorch module exactly (y = x @ W.T + b)."""
    w1, b1 = params["fc1"]
    w2, b2 = params["fc2"]
    w3, b3 = params["fc3"]
    w4, b4 = params["fc4"]
    x = jnp.tanh(state @ w1.T + b1)
    x = jnp.tanh(x @ w2.T + b2)
    x = jnp.tanh(x @ w3.T + b3)
    return x @ w4.T + b4


def reference_forward_kernel_policy(state, params):
    """Reference with the kernel's precision policy: fc1 f32, fc2..fc4 bf16 operands / f32 acc."""
    def mm_bf16(a, w):
        return jnp.dot(a.astype(jnp.bfloat16), w.T.astype(jnp.bfloat16),
                       preferred_element_type=jnp.float32)
    w1, b1 = params["fc1"]
    w2, b2 = params["fc2"]
    w3, b3 = params["fc3"]
    w4, b4 = params["fc4"]
    x = jnp.tanh(state @ w1.T + b1)
    x = jnp.tanh(mm_bf16(x, w2) + b2)
    x = jnp.tanh(mm_bf16(x, w3) + b3)
    return mm_bf16(x, w4) + b4


if __name__ == "__main__":
    # Small shapes consistent with the module's forward:
    #   observation_space.shape[0] = 8, fc1=fc2=fc3=32, n_actions=4, batch=2
    batch = 2
    obs_dim = 8
    fc1_dims = 32
    fc2_dims = 32
    fc3_dims = 32
    n_actions = 4

    key = jax.random.PRNGKey(0)
    k_state, k1, k2, k3, k4 = jax.random.split(key, 5)

    state = jax.random.normal(k_state, (batch, obs_dim), jnp.float32)

    params = {
        "fc1": init_linear(k1, obs_dim, fc1_dims),
        "fc2": init_linear(k2, fc1_dims, fc2_dims),
        "fc3": init_linear(k3, fc2_dims, fc3_dims),
        "fc4": init_linear(k4, fc3_dims, n_actions),
    }

    # One-time weight prep (hoisted out of the per-call path).
    prepared = prepare_params(params)

    actions = dqn_forward(state, prepared)
    actions = jax.block_until_ready(actions)
    assert actions.shape == (batch, n_actions)

    # Kernel mechanics: match a JAX reference using the same mixed-precision policy.
    ref_policy = reference_forward_kernel_policy(state, params)
    assert jnp.allclose(actions, ref_policy, atol=2e-2, rtol=2e-2), "mismatch vs policy reference"

    # Fidelity to the original f32 PyTorch semantics (loose tolerance for bf16 hidden layers).
    ref_f32 = reference_forward_f32(state, params)
    assert jnp.allclose(actions, ref_f32, atol=5e-2, rtol=5e-2), "mismatch vs f32 reference"

    print("KERNEL_OK")
</pallas_src>

<mosaic_0001>
module attributes {stable_mosaic.version = 11 : i64} {
  func.func @_dqn_kernel(%arg0: i32, %arg1: memref<8x128xf32, #tpu.memory_space<vmem>>, %arg2: memref<32x8xf32, #tpu.memory_space<vmem>>, %arg3: memref<32x1xf32, #tpu.memory_space<vmem>>, %arg4: memref<32x32xbf16, #tpu.memory_space<vmem>>, %arg5: memref<32x1xf32, #tpu.memory_space<vmem>>, %arg6: memref<32x32xbf16, #tpu.memory_space<vmem>>, %arg7: memref<32x1xf32, #tpu.memory_space<vmem>>, %arg8: memref<4x32xbf16, #tpu.memory_space<vmem>>, %arg9: memref<4x1xf32, #tpu.memory_space<vmem>>, %arg10: memref<4x128xf32, #tpu.memory_space<vmem>>) attributes {dimension_semantics = [#tpu.dimension_semantics<parallel>], iteration_bounds = array<i64: 1>, scalar_prefetch = 0 : i64, scratch_operands = 0 : i64, tpu.core_type = #tpu.core_type<tc>, window_params = [{transform_indices = @transform_0, window_bounds = array<i64: 8, 128>}, {pipeline_mode = #tpu.pipeline_mode<synchronous>, transform_indices = @transform_1, window_bounds = array<i64: 32, 8>}, {pipeline_mode = #tpu.pipeline_mode<synchronous>, transform_indices = @transform_2, window_bounds = array<i64: 32, 1>}, {pipeline_mode = #tpu.pipeline_mode<synchronous>, transform_indices = @transform_3, window_bounds = array<i64: 32, 32>}, {pipeline_mode = #tpu.pipeline_mode<synchronous>, transform_indices = @transform_4, window_bounds = array<i64: 32, 1>}, {pipeline_mode = #tpu.pipeline_mode<synchronous>, transform_indices = @transform_5, window_bounds = array<i64: 32, 32>}, {pipeline_mode = #tpu.pipeline_mode<synchronous>, transform_indices = @transform_6, window_bounds = array<i64: 32, 1>}, {pipeline_mode = #tpu.pipeline_mode<synchronous>, transform_indices = @transform_7, window_bounds = array<i64: 4, 32>}, {pipeline_mode = #tpu.pipeline_mode<synchronous>, transform_indices = @transform_8, window_bounds = array<i64: 4, 1>}, {transform_indices = @transform_9, window_bounds = array<i64: 4, 128>}]} {
    %c0 = arith.constant 0 : index
    %c0_0 = arith.constant 0 : index
    %0 = vector.load %arg1[%c0, %c0_0] : memref<8x128xf32, #tpu.memory_space<vmem>>, vector<8x128xf32>
    %c0_1 = arith.constant 0 : index
    %c0_2 = arith.constant 0 : index
    %1 = vector.load %arg2[%c0_1, %c0_2] : memref<32x8xf32, #tpu.memory_space<vmem>>, vector<32x8xf32>
    %cst = arith.constant dense<0.000000e+00> : vector<32x128xf32>
    %2 = tpu.matmul %1, %0, %cst {dimension_numbers = #tpu.dot_dimension_numbers<[1], [0], [0], [1], [0, 0, 1, 1], [], []>} : vector<32x8xf32>, vector<8x128xf32>, vector<32x128xf32> -> vector<32x128xf32>
    %c0_3 = arith.constant 0 : index
    %c0_4 = arith.constant 0 : index
    %3 = vector.load %arg3[%c0_3, %c0_4] : memref<32x1xf32, #tpu.memory_space<vmem>>, vector<32x1xf32>
    %4 = vector.broadcast %3 : vector<32x1xf32> to vector<32x128xf32>
    %5 = arith.addf %2, %4 : vector<32x128xf32>
    %6 = math.tanh %5 : vector<32x128xf32>
    %c0_5 = arith.constant 0 : index
    %c0_6 = arith.constant 0 : index
    %7 = vector.load %arg4[%c0_5, %c0_6] : memref<32x32xbf16, #tpu.memory_space<vmem>>, vector<32x32xbf16>
    %8 = arith.truncf %6 : vector<32x128xf32> to vector<32x128xbf16>
    %cst_7 = arith.constant dense<0.000000e+00> : vector<32x128xf32>
    %9 = tpu.matmul %7, %8, %cst_7 {dimension_numbers = #tpu.dot_dimension_numbers<[1], [0], [0], [1], [0, 0, 1, 1], [], []>} : vector<32x32xbf16>, vector<32x128xbf16>, vector<32x128xf32> -> vector<32x128xf32>
    %c0_8 = arith.constant 0 : index
    %c0_9 = arith.constant 0 : index
    %10 = vector.load %arg5[%c0_8, %c0_9] : memref<32x1xf32, #tpu.memory_space<vmem>>, vector<32x1xf32>
    %11 = vector.broadcast %10 : vector<32x1xf32> to vector<32x128xf32>
    %12 = arith.addf %9, %11 : vector<32x128xf32>
    %13 = math.tanh %12 : vector<32x128xf32>
    %c0_10 = arith.constant 0 : index
    %c0_11 = arith.constant 0 : index
    %14 = vector.load %arg6[%c0_10, %c0_11] : memref<32x32xbf16, #tpu.memory_space<vmem>>, vector<32x32xbf16>
    %15 = arith.truncf %13 : vector<32x128xf32> to vector<32x128xbf16>
    %cst_12 = arith.constant dense<0.000000e+00> : vector<32x128xf32>
    %16 = tpu.matmul %14, %15, %cst_12 {dimension_numbers = #tpu.dot_dimension_numbers<[1], [0], [0], [1], [0, 0, 1, 1], [], []>} : vector<32x32xbf16>, vector<32x128xbf16>, vector<32x128xf32> -> vector<32x128xf32>
    %c0_13 = arith.constant 0 : index
    %c0_14 = arith.constant 0 : index
    %17 = vector.load %arg7[%c0_13, %c0_14] : memref<32x1xf32, #tpu.memory_space<vmem>>, vector<32x1xf32>
    %18 = vector.broadcast %17 : vector<32x1xf32> to vector<32x128xf32>
    %19 = arith.addf %16, %18 : vector<32x128xf32>
    %20 = math.tanh %19 : vector<32x128xf32>
    %c0_15 = arith.constant 0 : index
    %c0_16 = arith.constant 0 : index
    %21 = vector.load %arg8[%c0_15, %c0_16] : memref<4x32xbf16, #tpu.memory_space<vmem>>, vector<4x32xbf16>
    %22 = arith.truncf %20 : vector<32x128xf32> to vector<32x128xbf16>
    %cst_17 = arith.constant dense<0.000000e+00> : vector<4x128xf32>
    %23 = tpu.matmul %21, %22, %cst_17 {dimension_numbers = #tpu.dot_dimension_numbers<[1], [0], [0], [1], [0, 0, 1, 1], [], []>} : vector<4x32xbf16>, vector<32x128xbf16>, vector<4x128xf32> -> vector<4x128xf32>
    %c0_18 = arith.constant 0 : index
    %c0_19 = arith.constant 0 : index
    %24 = vector.load %arg9[%c0_18, %c0_19] : memref<4x1xf32, #tpu.memory_space<vmem>>, vector<4x1xf32>
    %25 = vector.broadcast %24 : vector<4x1xf32> to vector<4x128xf32>
    %26 = arith.addf %23, %25 : vector<4x128xf32>
    %c0_20 = arith.constant 0 : index
    %c0_21 = arith.constant 0 : index
    %27 = vector.load %arg10[%c0_20, %c0_21] : memref<4x128xf32, #tpu.memory_space<vmem>>, vector<4x128xf32>
    tpu.vector_store %arg10[%c0_20, %c0_21], %26 {strides = array<i32>} : memref<4x128xf32, #tpu.memory_space<vmem>>, vector<4x128xf32>,
    return
  }
  func.func @transform_0(%arg0: i32) -> (i32, i32) {
    %c0_i32 = arith.constant 0 : i32
    %c0_i32_0 = arith.constant 0 : i32
    return %c0_i32, %arg0 : i32, i32
  }
  func.func @transform_1(%arg0: i32) -> (i32, i32) {
    %c0_i32 = arith.constant 0 : i32
    %c0_i32_0 = arith.constant 0 : i32
    %c0_i32_1 = arith.constant 0 : i32
    return %c0_i32, %c0_i32_0 : i32, i32
  }
  func.func @transform_2(%arg0: i32) -> (i32, i32) {
    %c0_i32 = arith.constant 0 : i32
    %c0_i32_0 = arith.constant 0 : i32
    %c0_i32_1 = arith.constant 0 : i32
    return %c0_i32, %c0_i32_0 : i32, i32
  }
  func.func @transform_3(%arg0: i32) -> (i32, i32) {
    %c0_i32 = arith.constant 0 : i32
    %c0_i32_0 = arith.constant 0 : i32
    %c0_i32_1 = arith.constant 0 : i32
    return %c0_i32, %c0_i32_0 : i32, i32
  }
  func.func @transform_4(%arg0: i32) -> (i32, i32) {
    %c0_i32 = arith.constant 0 : i32
    %c0_i32_0 = arith.constant 0 : i32
    %c0_i32_1 = arith.constant 0 : i32
    return %c0_i32, %c0_i32_0 : i32, i32
  }
  func.func @transform_5(%arg0: i32) -> (i32, i32) {
    %c0_i32 = arith.constant 0 : i32
    %c0_i32_0 = arith.constant 0 : i32
    %c0_i32_1 = arith.constant 0 : i32
    return %c0_i32, %c0_i32_0 : i32, i32
  }
  func.func @transform_6(%arg0: i32) -> (i32, i32) {
    %c0_i32 = arith.constant 0 : i32
    %c0_i32_0 = arith.constant 0 : i32
    %c0_i32_1 = arith.constant 0 : i32
    return %c0_i32, %c0_i32_0 : i32, i32
  }
  func.func @transform_7(%arg0: i32) -> (i32, i32) {
    %c0_i32 = arith.constant 0 : i32
    %c0_i32_0 = arith.constant 0 : i32
    %c0_i32_1 = arith.constant 0 : i32
    return %c0_i32, %c0_i32_0 : i32, i32
  }
  func.func @transform_8(%arg0: i32) -> (i32, i32) {
    %c0_i32 = arith.constant 0 : i32
    %c0_i32_0 = arith.constant 0 : i32
    %c0_i32_1 = arith.constant 0 : i32
    return %c0_i32, %c0_i32_0 : i32, i32
  }
  func.func @transform_9(%arg0: i32) -> (i32, i32) {
    %c0_i32 = arith.constant 0 : i32
    %c0_i32_0 = arith.constant 0 : i32
    return %c0_i32, %arg0 : i32, i32
  }
}

</mosaic_0001>

<llo_original>
// kernel: dqn_forward.1
$region0: #{dqn_forward.1}
  #allocation0 [shape = 'u32[]', space=smem, size = 0x4, offset = 0x4, fixed_abs, tag = 'smem constant byte address 0x4 - core index']
  #allocation1 [shape = 'u32[144,128]{1,0:T(1,128)}', space=vmem, size = 0x12000, scoped, tag = 'internal scratch']
  %s0 = inlined_call_operand.vmem [shape: f32[8,128], index: 0, kind: input, shape index: {}]
  %s1 = inlined_call_operand.vmem [shape: f32[32,8], index: 1, kind: input, shape index: {}]
  %s2 = inlined_call_operand.vmem [shape: f32[32,1], index: 2, kind: input, shape index: {}]
  %s3 = inlined_call_operand.vmem [shape: bf16[32,32], index: 3, kind: input, shape index: {}]
  %s4 = inlined_call_operand.vmem [shape: f32[32,1], index: 4, kind: input, shape index: {}]
  %s5 = inlined_call_operand.vmem [shape: bf16[32,32], index: 5, kind: input, shape index: {}]
  %s6 = inlined_call_operand.vmem [shape: f32[32,1], index: 6, kind: input, shape index: {}]
  %s7 = inlined_call_operand.vmem [shape: bf16[4,32], index: 7, kind: input, shape index: {}]
  %s8 = inlined_call_operand.vmem [shape: f32[4,1], index: 8, kind: input, shape index: {}]
  %s9 = inlined_call_operand.vmem [shape: f32[4,128], index: 9, kind: output, shape index: {}]
  %s10 = sld [smem:[#allocation0]]
  $region46: #{dqn_forward.1} parent=0
    _
  %s12 = ssub.s32 1, %s10
  %s13 = scalar_select 0, %s12, %s10
  // Predicated region
  $region2: #{dqn_forward.1} parent=0 // pred_check
    _
  $region3: #{dqn_forward.1} parent=0 // pred_check_branch
    %15 = sbr.rel (0) target = $region5
  $region4: #{dqn_forward.1} parent=0 // pred_region
    _
  $region5: #{dqn_forward.1} parent=0 // pred_fallthru
    _
  // Predicated region
  $region6: #{dqn_forward.1} parent=0 // pred_check
    _
  $region7: #{dqn_forward.1} parent=0 // pred_check_branch
    %17 = sbr.rel (0) target = $region9
  $region8: #{dqn_forward.1} parent=0 // pred_region
    _
  $region9: #{dqn_forward.1} parent=0 // pred_fallthru
    _
  // Predicated region
  $region10: #{dqn_forward.1} parent=0 // pred_check
    _
  $region11: #{dqn_forward.1} parent=0 // pred_check_branch
    %19 = sbr.rel (0) target = $region13
  $region12: #{dqn_forward.1} parent=0 // pred_region
    _
  $region13: #{dqn_forward.1} parent=0 // pred_fallthru
    _
  // Predicated region
  $region14: #{dqn_forward.1} parent=0 // pred_check
    _
  $region15: #{dqn_forward.1} parent=0 // pred_check_branch
    %21 = sbr.rel (0) target = $region17
  $region16: #{dqn_forward.1} parent=0 // pred_region
    _
  $region17: #{dqn_forward.1} parent=0 // pred_fallthru
    _
  // Predicated region
  $region18: #{dqn_forward.1} parent=0 // pred_check
    _
  $region19: #{dqn_forward.1} parent=0 // pred_check_branch
    %23 = sbr.rel (0) target = $region21
  $region20: #{dqn_forward.1} parent=0 // pred_region
    _
  $region21: #{dqn_forward.1} parent=0 // pred_fallthru
    _
  // Predicated region
  $region22: #{dqn_forward.1} parent=0 // pred_check
    _
  $region23: #{dqn_forward.1} parent=0 // pred_check_branch
    %25 = sbr.rel (0) target = $region25
  $region24: #{dqn_forward.1} parent=0 // pred_region
    _
  $region25: #{dqn_forward.1} parent=0 // pred_fallthru
    _
  // Predicated region
  $region26: #{dqn_forward.1} parent=0 // pred_check
    _
  $region27: #{dqn_forward.1} parent=0 // pred_check_branch
    %27 = sbr.rel (0) target = $region29
  $region28: #{dqn_forward.1} parent=0 // pred_region
    _
  $region29: #{dqn_forward.1} parent=0 // pred_fallthru
    _
  // Predicated region
  $region30: #{dqn_forward.1} parent=0 // pred_check
    _
  $region31: #{dqn_forward.1} parent=0 // pred_check_branch
    %29 = sbr.rel (0) target = $region33
  $region32: #{dqn_forward.1} parent=0 // pred_region
    _
  $region33: #{dqn_forward.1} parent=0 // pred_fallthru
    _
  // Predicated region
  $region34: #{dqn_forward.1} parent=0 // pred_check
    _
  $region35: #{dqn_forward.1} parent=0 // pred_check_branch
    %31 = sbr.rel (0) target = $region37
  $region36: #{dqn_forward.1} parent=0 // pred_region
    _
  $region37: #{dqn_forward.1} parent=0 // pred_fallthru
    _
  %v33 = vld [vmem:[%s0] sm:$0xff]
  %v34 = vld [vmem:[%s1] sm:$0xff]
  %v35 = vld [vmem:[%s1 + $0x8] sm:$0xff]
  %v36 = vld [vmem:[%s1 + $0x10] sm:$0xff]
  %v37 = vld [vmem:[%s1 + $0x18] sm:$0xff]
  %v38 = vld [vmem:[%s2] sm:$0xff]
  %v39 = vld [vmem:[%s2 + $0x8] sm:$0xff]
  %v40 = vld [vmem:[%s2 + $0x10] sm:$0xff]
  %v41 = vld [vmem:[%s2 + $0x18] sm:$0xff]
  %43 = vset.pattern.permute.xlu0 0
  %44 = vperm.xlu0 %43, %v38
  %v45 = vpop.permute.xlu0 %44
  %48 = vset.pattern.permute.xlu0 0
  %49 = vperm.xlu0 %48, %v39
  %v50 = vpop.permute.xlu0 %49
  %53 = vset.pattern.permute.xlu0 0
  %54 = vperm.xlu0 %53, %v40
  %v55 = vpop.permute.xlu0 %54
  %58 = vset.pattern.permute.xlu0 0
  %59 = vperm.xlu0 %58, %v41
  %v60 = vpop.permute.xlu0 %59
  %vm62 = vcmask 64512
  %v64 = vsel %vm62, %v34, 0
  %v67 = vsel %vm62, %v35, 0
  %v70 = vsel %vm62, %v36, 0
  %v73 = vsel %vm62, %v37, 0
  %75 = vmatprep.subr.mxu0 0.0
  %76 = vmatpush1.msra.mxu0 %v33
  %77 = vmatprep.subr.mxu0 0.0
  %78 = vmatpush1.msra.mxu0 0.0
  %79 = vmatprep.subr.mxu0 0.0
  %80 = vmatpush1.msra.mxu0 0.0
  %81 = vmatprep.subr.mxu0 0.0
  %82 = vmatpush1.msra.mxu0 0.0
  %83 = vmatprep.subr.mxu0 0.0
  %84 = vmatpush1.msra.mxu0 0.0
  %85 = vmatprep.subr.mxu0 0.0
  %86 = vmatpush1.msra.mxu0 0.0
  %87 = vmatprep.subr.mxu0 0.0
  %88 = vmatpush1.msra.mxu0 0.0
  %89 = vmatprep.subr.mxu0 0.0
  %90 = vmatpush1.msra.mxu0 0.0
  %91 = vmatprep.subr.mxu0 0.0
  %92 = vmatpush1.msra.mxu0 0.0
  %93 = vmatprep.subr.mxu0 0.0
  %94 = vmatpush1.msra.mxu0 0.0
  %95 = vmatprep.subr.mxu0 0.0
  %96 = vmatpush1.msra.mxu0 0.0
  %97 = vmatprep.subr.mxu0 0.0
  %98 = vmatpush1.msra.mxu0 0.0
  %99 = vmatprep.subr.mxu0 0.0
  %100 = vmatpush1.msra.mxu0 0.0
  %101 = vmatprep.subr.mxu0 0.0
  %102 = vmatpush1.msra.mxu0 0.0
  %103 = vmatprep.subr.mxu0 0.0
  %104 = vmatpush1.msra.mxu0 0.0
  %105 = vmatprep.subr.mxu0 0.0
  %106 = vmatpush1.msra.mxu0 0.0
  %107 = vmatprep.subr.mxu0 0.0
  %108 = vmatpush1.msra.mxu0 0.0
  %109 = vmatprep.subr.mxu0 0.0
  %110 = vmatpush1.msra.mxu0 0.0
  %111 = vmatprep.subr.mxu0 0.0
  %112 = vmatpush1.msra.mxu0 0.0
  %113 = vmatprep.subr.mxu0 0.0
  %114 = vmatpush1.msra.mxu0 0.0
  %115 = vmatprep.subr.mxu0 0.0
  %116 = vmatpush1.msra.mxu0 0.0
  %117 = vmatprep.subr.mxu0 0.0
  %118 = vmatpush1.msra.mxu0 0.0
  %119 = vmatprep.subr.mxu0 0.0
  %120 = vmatpush1.msra.mxu0 0.0
  %121 = vmatprep.subr.mxu0 0.0
  %122 = vmatpush1.msra.mxu0 0.0
  %123 = vmatprep.subr.mxu0 0.0
  %124 = vmatpush1.msra.mxu0 0.0
  %125 = vmatprep.subr.mxu0 0.0
  %126 = vmatpush1.msra.mxu0 0.0
  %127 = vmatprep.subr.mxu0 0.0
  %128 = vmatpush1.msra.mxu0 0.0
  %129 = vmatprep.subr.mxu0 0.0
  %130 = vmatpush1.msra.mxu0 0.0
  %131 = vmatprep.subr.mxu0 0.0
  %132 = vmatpush1.msra.mxu0 0.0
  %133 = vmatprep.subr.mxu0 0.0
  %134 = vmatpush1.msra.mxu0 0.0
  %135 = vmatprep.subr.mxu0 0.0
  %136 = vmatpush1.msra.mxu0 0.0
  %137 = vmatprep.subr.mxu0 0.0
  %138 = vmatpush1.msra.mxu0 0.0
  %139 = vmatprep.mubr.f32.mxu0 0.0
  %140 = vmatmul.mubr.f32.gmra.mrb[0].mxu0 %v64
  %v141 = vpop.f32.mrb[0].mxu0
  %v142 = vadd.f32 %v45, %v141
  %v143 = vpop.f32.mrb[0].mxu0
  %144 = vmatprep.mubr.f32.mxu0 0.0
  %145 = vmatmul.mubr.f32.gmra.mrb[0].mxu0 %v67
  %v146 = vpop.f32.mrb[0].mxu0
  %v147 = vadd.f32 %v50, %v146
  %v148 = vpop.f32.mrb[0].mxu0
  %149 = vmatprep.mubr.f32.mxu0 0.0
  %150 = vmatmul.mubr.f32.gmra.mrb[0].mxu0 %v70
  %v151 = vpop.f32.mrb[0].mxu0
  %v152 = vadd.f32 %v55, %v151
  %v153 = vpop.f32.mrb[0].mxu0
  %154 = vmatprep.mubr.f32.mxu0 0.0
  %155 = vmatmul.mubr.f32.gmra.mrb[0].mxu0 %v73
  %v156 = vpop.f32.mrb[0].mxu0
  %v157 = vadd.f32 %v60, %v156
  %v158 = vpop.f32.mrb[0].mxu0
  %159 = vdwg.mxu0
  %v160 = vtanh.pop %v142
  %v161 = vtanh.pop %v147
  %v162 = vtanh.pop %v152
  %v163 = vtanh.pop %v157
  %v164 = vld [vmem:[%s3] sm:$0xf]
  %v165 = vld [vmem:[%s3 + $0x4] sm:$0xf]
  %v166 = vld [vmem:[%s3 + $0x8] sm:$0xf]
  %v167 = vld [vmem:[%s3 + $0xc] sm:$0xf]
  %v168 = vpack.c.bf16 %v161, %v160
  %v169 = vpack.c.bf16 %v163, %v162
  %v170 = vld [vmem:[%s4] sm:$0xff]
  %v171 = vld [vmem:[%s4 + $0x8] sm:$0xff]
  %v172 = vld [vmem:[%s4 + $0x10] sm:$0xff]
  %v173 = vld [vmem:[%s4 + $0x18] sm:$0xff]
  %175 = vset.pattern.permute.xlu0 0
  %176 = vperm.xlu0 %175, %v170
  %v177 = vpop.permute.xlu0 %176
  %180 = vset.pattern.permute.xlu0 0
  %181 = vperm.xlu0 %180, %v171
  %v182 = vpop.permute.xlu0 %181
  %185 = vset.pattern.permute.xlu0 0
  %186 = vperm.xlu0 %185, %v172
  %v187 = vpop.permute.xlu0 %186
  %190 = vset.pattern.permute.xlu0 0
  %191 = vperm.xlu0 %190, %v173
  %v192 = vpop.permute.xlu0 %191
  %v198 = vunpack.c.l.b16 %v164
  %v199 = vunpack.c.l.b16 %v165
  %v200 = vunpack.c.l.b16 %v166
  %v201 = vunpack.c.l.b16 %v167
  %v202 = vpack.c.b16 %v199, %v198
  %v203 = vpack.c.b16 %v201, %v200
  %vm204 = vcmask 261120
  %v206 = vsel %vm204, %v202, 0
  %v209 = vsel %vm204, %v203, 0
  %211 = vmatprep.subr.bf16.mxu0 0
  %212 = vmatpush1.bf16.msra.mxu0 %v168
  %213 = vmatprep.subr.bf16.mxu0 0
  %214 = vmatpush1.bf16.msra.mxu0 %v169
  %215 = vmatprep.subr.bf16.mxu0 0
  %216 = vmatpush1.bf16.msra.mxu0 0
  %217 = vmatprep.subr.bf16.mxu0 0
  %218 = vmatpush1.bf16.msra.mxu0 0
  %219 = vmatprep.subr.bf16.mxu0 0
  %220 = vmatpush1.bf16.msra.mxu0 0
  %221 = vmatprep.subr.bf16.mxu0 0
  %222 = vmatpush1.bf16.msra.mxu0 0
  %223 = vmatprep.subr.bf16.mxu0 0
  %224 = vmatpush1.bf16.msra.mxu0 0
  %225 = vmatprep.subr.bf16.mxu0 0
  %226 = vmatpush1.bf16.msra.mxu0 0
  %227 = vmatprep.subr.bf16.mxu0 0
  %228 = vmatpush1.bf16.msra.mxu0 0
  %229 = vmatprep.subr.bf16.mxu0 0
  %230 = vmatpush1.bf16.msra.mxu0 0
  %231 = vmatprep.subr.bf16.mxu0 0
  %232 = vmatpush1.bf16.msra.mxu0 0
  %233 = vmatprep.subr.bf16.mxu0 0
  %234 = vmatpush1.bf16.msra.mxu0 0
  %235 = vmatprep.subr.bf16.mxu0 0
  %236 = vmatpush1.bf16.msra.mxu0 0
  %237 = vmatprep.subr.bf16.mxu0 0
  %238 = vmatpush1.bf16.msra.mxu0 0
  %239 = vmatprep.subr.bf16.mxu0 0
  %240 = vmatpush1.bf16.msra.mxu0 0
  %241 = vmatprep.subr.bf16.mxu0 0
  %242 = vmatpush1.bf16.msra.mxu0 0
  %243 = vmatprep.mubr.bf16.mxu0 0
  %244 = vmatmul.mubr.bf16.gmra.mrb[0].mxu0 %v206
  %v245 = vpop.f32.mrb[0].mxu0
  %v246 = vadd.f32 %v177, %v245
  %v247 = vpop.f32.mrb[0].mxu0
  %v248 = vpop.f32.mrb[0].mxu0
  %v249 = vadd.f32 %v182, %v248
  %v250 = vpop.f32.mrb[0].mxu0
  %251 = vmatprep.mubr.bf16.mxu0 0
  %252 = vmatmul.mubr.bf16.gmra.mrb[0].mxu0 %v209
  %v253 = vpop.f32.mrb[0].mxu0
  %v254 = vadd.f32 %v187, %v253
  %v255 = vpop.f32.mrb[0].mxu0
  %v256 = vpop.f32.mrb[0].mxu0
  %v257 = vadd.f32 %v192, %v256
  %v258 = vpop.f32.mrb[0].mxu0
  %259 = vdwg.mxu0
  %v260 = vtanh.pop %v246
  %v261 = vtanh.pop %v249
  %v262 = vtanh.pop %v254
  %v263 = vtanh.pop %v257
  %v264 = vld [vmem:[%s5] sm:$0xf]
  %v265 = vld [vmem:[%s5 + $0x4] sm:$0xf]
  %v266 = vld [vmem:[%s5 + $0x8] sm:$0xf]
  %v267 = vld [vmem:[%s5 + $0xc] sm:$0xf]
  %v268 = vpack.c.bf16 %v261, %v260
  %v269 = vpack.c.bf16 %v263, %v262
  %v270 = vld [vmem:[%s6] sm:$0xff]
  %v271 = vld [vmem:[%s6 + $0x8] sm:$0xff]
  %v272 = vld [vmem:[%s6 + $0x10] sm:$0xff]
  %v273 = vld [vmem:[%s6 + $0x18] sm:$0xff]
  %275 = vset.pattern.permute.xlu0 0
  %276 = vperm.xlu0 %275, %v270
  %v277 = vpop.permute.xlu0 %276
  %280 = vset.pattern.permute.xlu0 0
  %281 = vperm.xlu0 %280, %v271
  %v282 = vpop.permute.xlu0 %281
  %285 = vset.pattern.permute.xlu0 0
  %286 = vperm.xlu0 %285, %v272
  %v287 = vpop.permute.xlu0 %286
  %290 = vset.pattern.permute.xlu0 0
  %291 = vperm.xlu0 %290, %v273
  %v292 = vpop.permute.xlu0 %291
  %v298 = vunpack.c.l.b16 %v264
  %v299 = vunpack.c.l.b16 %v265
  %v300 = vunpack.c.l.b16 %v266
  %v301 = vunpack.c.l.b16 %v267
  %v302 = vpack.c.b16 %v299, %v298
  %v303 = vpack.c.b16 %v301, %v300
  %v305 = vsel %vm204, %v302, 0
  %v308 = vsel %vm204, %v303, 0
  %310 = vmatprep.subr.bf16.mxu0 0
  %311 = vmatpush1.bf16.msra.mxu0 %v268
  %312 = vmatprep.subr.bf16.mxu0 0
  %313 = vmatpush1.bf16.msra.mxu0 %v269
  %314 = vmatprep.subr.bf16.mxu0 0
  %315 = vmatpush1.bf16.msra.mxu0 0
  %316 = vmatprep.subr.bf16.mxu0 0
  %317 = vmatpush1.bf16.msra.mxu0 0
  %318 = vmatprep.subr.bf16.mxu0 0
  %319 = vmatpush1.bf16.msra.mxu0 0
  %320 = vmatprep.subr.bf16.mxu0 0
  %321 = vmatpush1.bf16.msra.mxu0 0
  %322 = vmatprep.subr.bf16.mxu0 0
  %323 = vmatpush1.bf16.msra.mxu0 0
  %324 = vmatprep.subr.bf16.mxu0 0
  %325 = vmatpush1.bf16.msra.mxu0 0
  %326 = vmatprep.subr.bf16.mxu0 0
  %327 = vmatpush1.bf16.msra.mxu0 0
  %328 = vmatprep.subr.bf16.mxu0 0
  %329 = vmatpush1.bf16.msra.mxu0 0
  %330 = vmatprep.subr.bf16.mxu0 0
  %331 = vmatpush1.bf16.msra.mxu0 0
  %332 = vmatprep.subr.bf16.mxu0 0
  %333 = vmatpush1.bf16.msra.mxu0 0
  %334 = vmatprep.subr.bf16.mxu0 0
  %335 = vmatpush1.bf16.msra.mxu0 0
  %336 = vmatprep.subr.bf16.mxu0 0
  %337 = vmatpush1.bf16.msra.mxu0 0
  %338 = vmatprep.subr.bf16.mxu0 0
  %339 = vmatpush1.bf16.msra.mxu0 0
  %340 = vmatprep.subr.bf16.mxu0 0
  %341 = vmatpush1.bf16.msra.mxu0 0
  %342 = vmatprep.mubr.bf16.mxu0 0
  %343 = vmatmul.mubr.bf16.gmra.mrb[0].mxu0 %v305
  %v344 = vpop.f32.mrb[0].mxu0
  %v345 = vadd.f32 %v277, %v344
  %v346 = vpop.f32.mrb[0].mxu0
  %v347 = vpop.f32.mrb[0].mxu0
  %v348 = vadd.f32 %v282, %v347
  %v349 = vpop.f32.mrb[0].mxu0
  %350 = vmatprep.mubr.bf16.mxu0 0
  %351 = vmatmul.mubr.bf16.gmra.mrb[0].mxu0 %v308
  %v352 = vpop.f32.mrb[0].mxu0
  %v353 = vadd.f32 %v287, %v352
  %v354 = vpop.f32.mrb[0].mxu0
  %v355 = vpop.f32.mrb[0].mxu0
  %v356 = vadd.f32 %v292, %v355
  %v357 = vpop.f32.mrb[0].mxu0
  %358 = vdwg.mxu0
  %v359 = vtanh.pop %v345
  %v360 = vtanh.pop %v348
  %v361 = vtanh.pop %v353
  %v362 = vtanh.pop %v356
  %v363 = vld [vmem:[%s7] sm:$0x3]
  %v364 = vpack.c.bf16 %v360, %v359
  %v365 = vpack.c.bf16 %v362, %v361
  %v366 = vld [vmem:[%s8] sm:$0xf]
  %368 = vset.pattern.permute.xlu0 0
  %369 = vperm.xlu0 %368, %v366
  %v370 = vpop.permute.xlu0 %369
  %v373 = vsel %vm204, %v363, 0
  %375 = vmatprep.subr.bf16.mxu0 0
  %376 = vmatpush1.bf16.msra.mxu0 %v364
  %377 = vmatprep.subr.bf16.mxu0 0
  %378 = vmatpush1.bf16.msra.mxu0 %v365
  %379 = vmatprep.subr.bf16.mxu0 0
  %380 = vmatpush1.bf16.msra.mxu0 0
  %381 = vmatprep.subr.bf16.mxu0 0
  %382 = vmatpush1.bf16.msra.mxu0 0
  %383 = vmatprep.subr.bf16.mxu0 0
  %384 = vmatpush1.bf16.msra.mxu0 0
  %385 = vmatprep.subr.bf16.mxu0 0
  %386 = vmatpush1.bf16.msra.mxu0 0
  %387 = vmatprep.subr.bf16.mxu0 0
  %388 = vmatpush1.bf16.msra.mxu0 0
  %389 = vmatprep.subr.bf16.mxu0 0
  %390 = vmatpush1.bf16.msra.mxu0 0
  %391 = vmatprep.subr.bf16.mxu0 0
  %392 = vmatpush1.bf16.msra.mxu0 0
  %393 = vmatprep.subr.bf16.mxu0 0
  %394 = vmatpush1.bf16.msra.mxu0 0
  %395 = vmatprep.subr.bf16.mxu0 0
  %396 = vmatpush1.bf16.msra.mxu0 0
  %397 = vmatprep.subr.bf16.mxu0 0
  %398 = vmatpush1.bf16.msra.mxu0 0
  %399 = vmatprep.subr.bf16.mxu0 0
  %400 = vmatpush1.bf16.msra.mxu0 0
  %401 = vmatprep.subr.bf16.mxu0 0
  %402 = vmatpush1.bf16.msra.mxu0 0
  %403 = vmatprep.subr.bf16.mxu0 0
  %404 = vmatpush1.bf16.msra.mxu0 0
  %405 = vmatprep.subr.bf16.mxu0 0
  %406 = vmatpush1.bf16.msra.mxu0 0
  %407 = vmatprep.mubr.bf16.mxu0 0
  %408 = vmatmul.mubr.bf16.gmra.mrb[0].mxu0 %v373
  %v409 = vpop.f32.mrb[0].mxu0
  %v410 = vadd.f32 %v370, %v409
  %v411 = vpop.f32.mrb[0].mxu0
  %v412 = vpop.f32.mrb[0].mxu0
  %v413 = vpop.f32.mrb[0].mxu0
  %414 = vdwg.mxu0
  %415 = vst [vmem:[%s9] sm:$0xf] %v410
  // Predicated region
  $region38: #{dqn_forward.1} parent=0 // pred_check
    _
  $region39: #{dqn_forward.1} parent=0 // pred_check_branch
    %417 = sbr.rel (0) target = $region41
  $region40: #{dqn_forward.1} parent=0 // pred_region
    _
  $region41: #{dqn_forward.1} parent=0 // pred_fallthru
    _
  // Predicated region
  $region42: #{dqn_forward.1} parent=0 // pred_check
    _
  $region43: #{dqn_forward.1} parent=0 // pred_check_branch
    %419 = sbr.rel (0) target = $region45
  $region44: #{dqn_forward.1} parent=0 // pred_region
    _
  $region45: #{dqn_forward.1} parent=0 // pred_fallthru
    _

</llo_original>
